<compile_context>
chip_gen: v7x
topology: tpu7x:2x2x1
jax: 0.10.0
libtpu: 0.0.40
codegen_flags: <defaults>
</compile_context>

<pallas_src>
import functools

import jax
import jax.numpy as jnp
from jax import lax
from jax.experimental import pallas as pl
from jax.experimental.pallas import tpu as pltpu

HIDDEN = 16  # fc1 / fc2 width from the PyTorch module


def _round_up(x, m):
    return ((x + m - 1) // m) * m


def _critic_kernel(x_ref, p_ref, o_ref, *, state_dim, mm_dtype):
    """One batch tile: x is (TB, state_dim); params are one lane-aligned slab."""
    S, H = state_dim, HIDDEN
    S_pad = _round_up(S, 128)
    # Static, 128-lane-aligned column offsets in the packed slab (16, S_pad+640):
    c_w2 = S_pad            # fc2.weight   (16, 16)
    c_b1 = S_pad + 128      # fc1.bias     (16,)  stored as a column
    c_b2 = S_pad + 256      # fc2.bias
    c_w3 = S_pad + 384      # fc3.weight row stored as a column
    c_b3 = S_pad + 512      # fc3.bias replicated down the column

    x = x_ref[...]                                 # (TB, S) natural row-major
    w1 = p_ref[:, 0:S]                             # (16, S)
    w2 = p_ref[:, c_w2:c_w2 + H]                   # (16, 16)
    b1 = p_ref[:, c_b1:c_b1 + 1]                   # (16, 1)
    b2 = p_ref[:, c_b2:c_b2 + 1]                   # (16, 1)
    w3 = p_ref[:, c_w3:c_w3 + 1]                   # (16, 1)
    b3 = p_ref[0:1, c_b3:c_b3 + 1]                 # (1, 1)

    # fc1 + ReLU: contract the feature axis of BOTH operands -> (16, TB),
    # no materialized x^T.  bf16 operands, f32 MXU accumulation.
    h1 = lax.dot_general(
        w1.astype(mm_dtype), x.astype(mm_dtype),
        dimension_numbers=(((1,), (1,)), ((), ())),
        preferred_element_type=jnp.float32) + b1
    h1 = jnp.maximum(h1, 0.0)                      # (16, TB)

    # fc2 + ReLU
    h2 = jnp.dot(w2.astype(mm_dtype), h1.astype(mm_dtype),
                 preferred_element_type=jnp.float32) + b2
    h2 = jnp.maximum(h2, 0.0)                      # (16, TB)

    # fc3 (out_features = 1): VPU multiply + cross-sublane reduce (f32), no MXU.
    v = jnp.sum(h2 * w3, axis=0, keepdims=True) + b3      # (1, TB) lane-dense
    o_ref[...] = v.astype(o_ref.dtype)


def pack_params(p, state_dim, hidden=HIDDEN):
    """Pack w1,b1,w2,b2,w3,b3 into one (hidden, S_pad+640) f32 slab.

    Every field starts on a 128-lane boundary so in-kernel slices are aligned.
    """
    S, H = state_dim, hidden
    S_pad = _round_up(S, 128)
    slab = jnp.zeros((H, S_pad + 5 * 128), jnp.float32)
    slab = slab.at[:, 0:S].set(p["w1"])                    # (16, S)
    slab = slab.at[:, S_pad:S_pad + H].set(p["w2"])        # (16, 16)
    slab = slab.at[:, S_pad + 128].set(p["b1"])            # (16,)
    slab = slab.at[:, S_pad + 256].set(p["b2"])            # (16,)
    slab = slab.at[:, S_pad + 384].set(p["w3"][0])         # fc3.weight (1,16) -> column
    slab = slab.at[:, S_pad + 512].set(p["b3"][0])         # b3 broadcast down the column
    return slab


@functools.partial(jax.jit, static_argnames=("batch_tile", "matmul_dtype"))
def critic_forward(state, param_slab, *, batch_tile=2048, matmul_dtype="bf16"):
    """state: (B, state_dim) float32 -> (B, 1) float32 value estimates."""
    B, S = state.shape
    mm_dtype = jnp.bfloat16 if matmul_dtype == "bf16" else jnp.float32

    # Lane-dense batch tile: always a multiple of 128, collapsed toward one /
    # few grid steps at small B.  At large B the grid (marked "parallel")
    # shards across both v7x TensorCores.  VMEM per tile is tiny (S*TB*4 B).
    B128 = _round_up(B, 128)
    TB = min(_round_up(batch_tile, 128), B128)
    G = pl.cdiv(B128, TB)
    B_pad = G * TB

    # Row-only pad, and only when needed (no transpose pass; for batch sizes
    # that are a multiple of the tile this is a no-op).
    x = state if B_pad == B else jnp.pad(state, ((0, B_pad - B), (0, 0)))

    out = pl.pallas_call(
        functools.partial(_critic_kernel, state_dim=S, mm_dtype=mm_dtype),
        out_shape=jax.ShapeDtypeStruct((1, B_pad), jnp.float32),
        grid=(G,),
        in_specs=[
            pl.BlockSpec((TB, S), lambda i: (i, 0)),            # natural-layout batch tile
            pl.BlockSpec(param_slab.shape, lambda i: (0, 0)),   # packed params: one DMA
        ],
        out_specs=pl.BlockSpec((1, TB), lambda i: (0, i)),      # lane-dense output tile
        compiler_params=pltpu.CompilerParams(
            dimension_semantics=("parallel",)),                 # megacore over batch
    )(x, param_slab)

    return out.reshape(-1)[:B][:, None]                         # back to PyTorch (B, 1)


def init_params(key, state_dim, hidden=HIDDEN):
    """PyTorch nn.Linear-style init: weight (out,in), bias (out,), U[-1/sqrt(in), 1/sqrt(in)]."""
    ks = jax.random.split(key, 6)

    def linear(kw, kb, fan_in, fan_out):
        bound = 1.0 / jnp.sqrt(jnp.float32(fan_in))
        w = jax.random.uniform(kw, (fan_out, fan_in), jnp.float32, -bound, bound)
        b = jax.random.uniform(kb, (fan_out,), jnp.float32, -bound, bound)
        return w, b

    w1, b1 = linear(ks[0], ks[1], state_dim, hidden)
    w2, b2 = linear(ks[2], ks[3], hidden, hidden)
    w3, b3 = linear(ks[4], ks[5], hidden, 1)
    return {"w1": w1, "b1": b1, "w2": w2, "b2": b2, "w3": w3, "b3": b3}


def critic_ref(state, p):
    """Pure-JAX reference (exactly the PyTorch forward)."""
    v = jnp.maximum(state @ p["w1"].T + p["b1"], 0.0)
    v = jnp.maximum(v @ p["w2"].T + p["b2"], 0.0)
    return v @ p["w3"].T + p["b3"]


if __name__ == "__main__":
    key = jax.random.PRNGKey(0)
    k_params, k_state, k_state2 = jax.random.split(key, 3)

    # Small, deterministic shapes: CartPole-style state_dim=4, batch=8.
    state_dim = 4
    batch = 8
    params = init_params(k_params, state_dim)
    slab = pack_params(params, state_dim)
    state = jax.random.normal(k_state, (batch, state_dim), jnp.float32)
    ref = critic_ref(state, params)

    # Bit-faithful f32 MXU-operand path.
    out_f32 = jax.block_until_ready(critic_forward(state, slab, matmul_dtype="f32"))
    assert out_f32.shape == (batch, 1), out_f32.shape
    assert jnp.allclose(out_f32, ref, atol=1e-5, rtol=1e-5), \
        float(jnp.abs(out_f32 - ref).max())

    # Default bf16 MXU-operand path (f32 accumulation) -> looser tolerance.
    out_bf16 = jax.block_until_ready(critic_forward(state, slab))
    assert out_bf16.shape == (batch, 1), out_bf16.shape
    assert jnp.allclose(out_bf16, ref, atol=5e-2, rtol=5e-2), \
        float(jnp.abs(out_bf16 - ref).max())

    # Exercise multiple grid steps + non-divisible batch (padding path).
    batch2 = 300
    state2 = jax.random.normal(k_state2, (batch2, state_dim), jnp.float32)
    ref2 = critic_ref(state2, params)
    out2 = jax.block_until_ready(
        critic_forward(state2, slab, batch_tile=128, matmul_dtype="f32"))
    assert out2.shape == (batch2, 1), out2.shape
    assert jnp.allclose(out2, ref2, atol=1e-5, rtol=1e-5), \
        float(jnp.abs(out2 - ref2).max())

    print("KERNEL_OK")
</pallas_src>

<mosaic_0001>
module attributes {stable_mosaic.version = 11 : i64} {
  func.func @_critic_kernel(%arg0: i32, %arg1: memref<128x4xf32, #tpu.memory_space<vmem>>, %arg2: memref<16x768xf32, #tpu.memory_space<vmem>>, %arg3: memref<1x128xf32, #tpu.memory_space<vmem>>) attributes {dimension_semantics = [#tpu.dimension_semantics<parallel>], iteration_bounds = array<i64: 1>, scalar_prefetch = 0 : i64, scratch_operands = 0 : i64, tpu.core_type = #tpu.core_type<tc>, window_params = [{transform_indices = @transform_0, window_bounds = array<i64: 128, 4>}, {pipeline_mode = #tpu.pipeline_mode<synchronous>, transform_indices = @transform_1, window_bounds = array<i64: 16, 768>}, {transform_indices = @transform_2, window_bounds = array<i64: 1, 128>}]} {
    %c0 = arith.constant 0 : index
    %c0_0 = arith.constant 0 : index
    %0 = vector.load %arg1[%c0, %c0_0] : memref<128x4xf32, #tpu.memory_space<vmem>>, vector<128x4xf32>
    %c0_1 = arith.constant 0 : index
    %c0_2 = arith.constant 0 : index
    %1 = vector.load %arg2[%c0_1, %c0_2] : memref<16x768xf32, #tpu.memory_space<vmem>>, vector<16x4xf32>
    %c0_3 = arith.constant 0 : index
    %c128 = arith.constant 128 : index
    %2 = vector.load %arg2[%c0_3, %c128] : memref<16x768xf32, #tpu.memory_space<vmem>>, vector<16x16xf32>
    %c0_4 = arith.constant 0 : index
    %c256 = arith.constant 256 : index
    %3 = vector.load %arg2[%c0_4, %c256] : memref<16x768xf32, #tpu.memory_space<vmem>>, vector<16x1xf32>
    %c0_5 = arith.constant 0 : index
    %c384 = arith.constant 384 : index
    %4 = vector.load %arg2[%c0_5, %c384] : memref<16x768xf32, #tpu.memory_space<vmem>>, vector<16x1xf32>
    %c0_6 = arith.constant 0 : index
    %c512 = arith.constant 512 : index
    %5 = vector.load %arg2[%c0_6, %c512] : memref<16x768xf32, #tpu.memory_space<vmem>>, vector<16x1xf32>
    %c0_7 = arith.constant 0 : index
    %c640 = arith.constant 640 : index
    %6 = vector.load %arg2[%c0_7, %c640] : memref<16x768xf32, #tpu.memory_space<vmem>>, vector<1x1xf32>
    %cst = arith.constant dense<0.000000e+00> : vector<16x128xf32>
    %7 = tpu.matmul %1, %0, %cst {dimension_numbers = #tpu.dot_dimension_numbers<[1], [1], [0], [0], [0, 0, 1, 0], [], []>} : vector<16x4xf32>, vector<128x4xf32>, vector<16x128xf32> -> vector<16x128xf32>
    %8 = vector.broadcast %3 : vector<16x1xf32> to vector<16x128xf32>
    %9 = arith.addf %7, %8 : vector<16x128xf32>
    %cst_8 = arith.constant 0.000000e+00 : f32
    %10 = vector.broadcast %cst_8 : f32 to vector<16x128xf32>
    %11 = arith.maximumf %9, %10 : vector<16x128xf32>
    %cst_9 = arith.constant dense<0.000000e+00> : vector<16x128xf32>
    %12 = tpu.matmul %2, %11, %cst_9 {dimension_numbers = #tpu.dot_dimension_numbers<[1], [0], [0], [1], [0, 0, 1, 1], [], []>} : vector<16x16xf32>, vector<16x128xf32>, vector<16x128xf32> -> vector<16x128xf32>
    %13 = vector.broadcast %4 : vector<16x1xf32> to vector<16x128xf32>
    %14 = arith.addf %12, %13 : vector<16x128xf32>
    %cst_10 = arith.constant 0.000000e+00 : f32
    %15 = vector.broadcast %cst_10 : f32 to vector<16x128xf32>
    %16 = arith.maximumf %14, %15 : vector<16x128xf32>
    %17 = vector.broadcast %5 : vector<16x1xf32> to vector<16x128xf32>
    %18 = arith.mulf %16, %17 : vector<16x128xf32>
    %cst_11 = arith.constant dense<0.000000e+00> : vector<128xf32>
    %19 = vector.multi_reduction <add>, %18, %cst_11 [0] : vector<16x128xf32> to vector<128xf32>
    %20 = vector.shape_cast %19 : vector<128xf32> to vector<1x128xf32>
    %21 = vector.broadcast %6 : vector<1x1xf32> to vector<1x128xf32>
    %22 = arith.addf %20, %21 : vector<1x128xf32>
    %c0_12 = arith.constant 0 : index
    %c0_13 = arith.constant 0 : index
    %23 = vector.load %arg3[%c0_12, %c0_13] : memref<1x128xf32, #tpu.memory_space<vmem>>, vector<1x128xf32>
    tpu.vector_store %arg3[%c0_12, %c0_13], %22 {strides = array<i32>} : memref<1x128xf32, #tpu.memory_space<vmem>>, vector<1x128xf32>,
    return
  }
  func.func @transform_0(%arg0: i32) -> (i32, i32) {
    %c0_i32 = arith.constant 0 : i32
    %c0_i32_0 = arith.constant 0 : i32
    return %arg0, %c0_i32 : i32, i32
  }
  func.func @transform_1(%arg0: i32) -> (i32, i32) {
    %c0_i32 = arith.constant 0 : i32
    %c0_i32_0 = arith.constant 0 : i32
    %c0_i32_1 = arith.constant 0 : i32
    return %c0_i32, %c0_i32_0 : i32, i32
  }
  func.func @transform_2(%arg0: i32) -> (i32, i32) {
    %c0_i32 = arith.constant 0 : i32
    %c0_i32_0 = arith.constant 0 : i32
    return %c0_i32, %arg0 : i32, i32
  }
}

</mosaic_0001>

<llo_original>
// kernel: critic_forward.1
$region0: #{critic_forward.1}
  #allocation0 [shape = 'u32[]', space=smem, size = 0x4, offset = 0x4, fixed_abs, tag = 'smem constant byte address 0x4 - core index']
  #allocation1 [shape = 'u32[144,128]{1,0:T(1,128)}', space=vmem, size = 0x12000, scoped, tag = 'internal scratch']
  %s0 = inlined_call_operand.vmem [shape: f32[128,4], index: 0, kind: input, shape index: {}]
  %s1 = inlined_call_operand.vmem [shape: f32[16,768], index: 1, kind: input, shape index: {}]
  %s2 = inlined_call_operand.vmem [shape: f32[1,128], index: 2, kind: output, shape index: {}]
  %s3 = sld [smem:[#allocation0]]
  $region18: #{critic_forward.1} parent=0
    _
  %s5 = ssub.s32 1, %s3
  %s6 = scalar_select 0, %s5, %s3
  // Predicated region
  $region2: #{critic_forward.1} parent=0 // pred_check
    _
  $region3: #{critic_forward.1} parent=0 // pred_check_branch
    %8 = sbr.rel (0) target = $region5
  $region4: #{critic_forward.1} parent=0 // pred_region
    _
  $region5: #{critic_forward.1} parent=0 // pred_fallthru
    _
  // Predicated region
  $region6: #{critic_forward.1} parent=0 // pred_check
    _
  $region7: #{critic_forward.1} parent=0 // pred_check_branch
    %10 = sbr.rel (0) target = $region9
  $region8: #{critic_forward.1} parent=0 // pred_region
    _
  $region9: #{critic_forward.1} parent=0 // pred_fallthru
    _
  %v11 = vld [vmem:[%s0] sm:$0xff]
  %v12 = vld [vmem:[%s0 + $0x8] sm:$0xff]
  %v13 = vld [vmem:[%s0 + $0x10] sm:$0xff]
  %v14 = vld [vmem:[%s0 + $0x18] sm:$0xff]
  %v15 = vld [vmem:[%s0 + $0x20] sm:$0xff]
  %v16 = vld [vmem:[%s0 + $0x28] sm:$0xff]
  %v17 = vld [vmem:[%s0 + $0x30] sm:$0xff]
  %v18 = vld [vmem:[%s0 + $0x38] sm:$0xff]
  %v19 = vld [vmem:[%s0 + $0x40] sm:$0xff]
  %v20 = vld [vmem:[%s0 + $0x48] sm:$0xff]
  %v21 = vld [vmem:[%s0 + $0x50] sm:$0xff]
  %v22 = vld [vmem:[%s0 + $0x58] sm:$0xff]
  %v23 = vld [vmem:[%s0 + $0x60] sm:$0xff]
  %v24 = vld [vmem:[%s0 + $0x68] sm:$0xff]
  %v25 = vld [vmem:[%s0 + $0x70] sm:$0xff]
  %v26 = vld [vmem:[%s0 + $0x78] sm:$0xff]
  %v27 = vld [vmem:[%s1] sm:$0xff]
  %v28 = vld [vmem:[%s1 + $0x30] sm:$0xff]
  %v29 = vld [vmem:[%s1 + $0x8] sm:$0xff]
  %v30 = vld [vmem:[%s1 + $0x38] sm:$0xff]
  %v31 = vld [vmem:[%s1 + $0x10] sm:$0xff]
  %v32 = vld [vmem:[%s1 + $0x40] sm:$0xff]
  %v33 = vld [vmem:[%s1 + $0x18] sm:$0xff]
  %v34 = vld [vmem:[%s1 + $0x48] sm:$0xff]
  %v35 = vld [vmem:[%s1 + $0x20] sm:$0xff]
  %v36 = vld [vmem:[%s1 + $0x50] sm:$0xff]
  %v37 = vld [vmem:[%s1 + $0x28] ss:$0 sm:$0xff]
  %39 = vset.pattern.permute.xlu0 0
  %40 = vperm.xlu0 %39, %v31
  %v41 = vpop.permute.xlu0 %40
  %44 = vset.pattern.permute.xlu0 0
  %45 = vperm.xlu0 %44, %v32
  %v46 = vpop.permute.xlu0 %45
  %vm48 = vcmask 31744
  %v50 = vsel %vm48, %v27, 0
  %v53 = vsel %vm48, %v28, 0
  %v56 = vsel %vm48, %v11, 0
  %v59 = vsel %vm48, %v12, 0
  %v62 = vsel %vm48, %v13, 0
  %v65 = vsel %vm48, %v14, 0
  %v68 = vsel %vm48, %v15, 0
  %v71 = vsel %vm48, %v16, 0
  %v74 = vsel %vm48, %v17, 0
  %v77 = vsel %vm48, %v18, 0
  %v80 = vsel %vm48, %v19, 0
  %v83 = vsel %vm48, %v20, 0
  %v86 = vsel %vm48, %v21, 0
  %v89 = vsel %vm48, %v22, 0
  %v92 = vsel %vm48, %v23, 0
  %v95 = vsel %vm48, %v24, 0
  %v98 = vsel %vm48, %v25, 0
  %v101 = vsel %vm48, %v26, 0
  %103 = vmatprep.subr.mxu0 0.0
  %104 = vmatpush1.xpose.msra.mxu0 %v56
  %105 = vmatprep.subr.mxu0 0.0
  %106 = vmatpush1.xpose.msra.mxu0 %v59
  %107 = vmatprep.subr.mxu0 0.0
  %108 = vmatpush1.xpose.msra.mxu0 %v62
  %109 = vmatprep.subr.mxu0 0.0
  %110 = vmatpush1.xpose.msra.mxu0 %v65
  %111 = vmatprep.subr.mxu0 0.0
  %112 = vmatpush1.xpose.msra.mxu0 %v68
  %113 = vmatprep.subr.mxu0 0.0
  %114 = vmatpush1.xpose.msra.mxu0 %v71
  %115 = vmatprep.subr.mxu0 0.0
  %116 = vmatpush1.xpose.msra.mxu0 %v74
  %117 = vmatprep.subr.mxu0 0.0
  %118 = vmatpush1.xpose.msra.mxu0 %v77
  %119 = vmatprep.subr.mxu0 0.0
  %120 = vmatpush1.xpose.msra.mxu0 %v80
  %121 = vmatprep.subr.mxu0 0.0
  %122 = vmatpush1.xpose.msra.mxu0 %v83
  %123 = vmatprep.subr.mxu0 0.0
  %124 = vmatpush1.xpose.msra.mxu0 %v86
  %125 = vmatprep.subr.mxu0 0.0
  %126 = vmatpush1.xpose.msra.mxu0 %v89
  %127 = vmatprep.subr.mxu0 0.0
  %128 = vmatpush1.xpose.msra.mxu0 %v92
  %129 = vmatprep.subr.mxu0 0.0
  %130 = vmatpush1.xpose.msra.mxu0 %v95
  %131 = vmatprep.subr.mxu0 0.0
  %132 = vmatpush1.xpose.msra.mxu0 %v98
  %133 = vmatprep.subr.mxu0 0.0
  %134 = vmatpush1.xpose.msra.mxu0 %v101
  %135 = vmatprep.subr.mxu0 0.0
  %136 = vmatpush1.xpose.msra.mxu0 0.0
  %137 = vmatprep.subr.mxu0 0.0
  %138 = vmatpush1.xpose.msra.mxu0 0.0
  %139 = vmatprep.subr.mxu0 0.0
  %140 = vmatpush1.xpose.msra.mxu0 0.0
  %141 = vmatprep.subr.mxu0 0.0
  %142 = vmatpush1.xpose.msra.mxu0 0.0
  %143 = vmatprep.subr.mxu0 0.0
  %144 = vmatpush1.xpose.msra.mxu0 0.0
  %145 = vmatprep.subr.mxu0 0.0
  %146 = vmatpush1.xpose.msra.mxu0 0.0
  %147 = vmatprep.subr.mxu0 0.0
  %148 = vmatpush1.xpose.msra.mxu0 0.0
  %149 = vmatprep.subr.mxu0 0.0
  %150 = vmatpush1.xpose.msra.mxu0 0.0
  %151 = vmatprep.subr.mxu0 0.0
  %152 = vmatpush1.xpose.msra.mxu0 0.0
  %153 = vmatprep.subr.mxu0 0.0
  %154 = vmatpush1.xpose.msra.mxu0 0.0
  %155 = vmatprep.subr.mxu0 0.0
  %156 = vmatpush1.xpose.msra.mxu0 0.0
  %157 = vmatprep.subr.mxu0 0.0
  %158 = vmatpush1.xpose.msra.mxu0 0.0
  %159 = vmatprep.subr.mxu0 0.0
  %160 = vmatpush1.xpose.msra.mxu0 0.0
  %161 = vmatprep.subr.mxu0 0.0
  %162 = vmatpush1.xpose.msra.mxu0 0.0
  %163 = vmatprep.subr.mxu0 0.0
  %164 = vmatpush1.xpose.msra.mxu0 0.0
  %165 = vmatprep.subr.mxu0 0.0
  %166 = vmatpush1.xpose.msra.mxu0 0.0
  %167 = vmatprep.mubr.f32.mxu0 0.0
  %168 = vmatmul.mubr.f32.gmra.mrb[0].mxu0 %v50
  %v169 = vpop.f32.mrb[0].mxu0
  %v170 = vadd.f32 %v41, %v169
  %v171 = vpop.f32.mrb[0].mxu0
  %172 = vmatprep.mubr.f32.mxu0 0.0
  %173 = vmatmul.mubr.f32.gmra.mrb[0].mxu0 %v53
  %v174 = vpop.f32.mrb[0].mxu0
  %v175 = vadd.f32 %v46, %v174
  %v176 = vpop.f32.mrb[0].mxu0
  %177 = vdwg.mxu0
  %v178 = vmax.f32 %v170, 0.0
  %v179 = vmax.f32 %v175, 0.0
  %181 = vset.pattern.permute.xlu0 0
  %182 = vperm.xlu0 %181, %v33
  %v183 = vpop.permute.xlu0 %182
  %186 = vset.pattern.permute.xlu0 0
  %187 = vperm.xlu0 %186, %v34
  %v188 = vpop.permute.xlu0 %187
  %vm190 = vcmask 130048
  %v192 = vsel %vm190, %v29, 0
  %v195 = vsel %vm190, %v30, 0
  %197 = vmatprep.subr.mxu0 0.0
  %198 = vmatpush1.msra.mxu0 %v178
  %199 = vmatprep.subr.mxu0 0.0
  %200 = vmatpush1.msra.mxu0 %v179
  %201 = vmatprep.subr.mxu0 0.0
  %202 = vmatpush1.msra.mxu0 0.0
  %203 = vmatprep.subr.mxu0 0.0
  %204 = vmatpush1.msra.mxu0 0.0
  %205 = vmatprep.subr.mxu0 0.0
  %206 = vmatpush1.msra.mxu0 0.0
  %207 = vmatprep.subr.mxu0 0.0
  %208 = vmatpush1.msra.mxu0 0.0
  %209 = vmatprep.subr.mxu0 0.0
  %210 = vmatpush1.msra.mxu0 0.0
  %211 = vmatprep.subr.mxu0 0.0
  %212 = vmatpush1.msra.mxu0 0.0
  %213 = vmatprep.subr.mxu0 0.0
  %214 = vmatpush1.msra.mxu0 0.0
  %215 = vmatprep.subr.mxu0 0.0
  %216 = vmatpush1.msra.mxu0 0.0
  %217 = vmatprep.subr.mxu0 0.0
  %218 = vmatpush1.msra.mxu0 0.0
  %219 = vmatprep.subr.mxu0 0.0
  %220 = vmatpush1.msra.mxu0 0.0
  %221 = vmatprep.subr.mxu0 0.0
  %222 = vmatpush1.msra.mxu0 0.0
  %223 = vmatprep.subr.mxu0 0.0
  %224 = vmatpush1.msra.mxu0 0.0
  %225 = vmatprep.subr.mxu0 0.0
  %226 = vmatpush1.msra.mxu0 0.0
  %227 = vmatprep.subr.mxu0 0.0
  %228 = vmatpush1.msra.mxu0 0.0
  %229 = vmatprep.subr.mxu0 0.0
  %230 = vmatpush1.msra.mxu0 0.0
  %231 = vmatprep.subr.mxu0 0.0
  %232 = vmatpush1.msra.mxu0 0.0
  %233 = vmatprep.subr.mxu0 0.0
  %234 = vmatpush1.msra.mxu0 0.0
  %235 = vmatprep.subr.mxu0 0.0
  %236 = vmatpush1.msra.mxu0 0.0
  %237 = vmatprep.subr.mxu0 0.0
  %238 = vmatpush1.msra.mxu0 0.0
  %239 = vmatprep.subr.mxu0 0.0
  %240 = vmatpush1.msra.mxu0 0.0
  %241 = vmatprep.subr.mxu0 0.0
  %242 = vmatpush1.msra.mxu0 0.0
  %243 = vmatprep.subr.mxu0 0.0
  %244 = vmatpush1.msra.mxu0 0.0
  %245 = vmatprep.subr.mxu0 0.0
  %246 = vmatpush1.msra.mxu0 0.0
  %247 = vmatprep.subr.mxu0 0.0
  %248 = vmatpush1.msra.mxu0 0.0
  %249 = vmatprep.subr.mxu0 0.0
  %250 = vmatpush1.msra.mxu0 0.0
  %251 = vmatprep.subr.mxu0 0.0
  %252 = vmatpush1.msra.mxu0 0.0
  %253 = vmatprep.subr.mxu0 0.0
  %254 = vmatpush1.msra.mxu0 0.0
  %255 = vmatprep.subr.mxu0 0.0
  %256 = vmatpush1.msra.mxu0 0.0
  %257 = vmatprep.subr.mxu0 0.0
  %258 = vmatpush1.msra.mxu0 0.0
  %259 = vmatprep.subr.mxu0 0.0
  %260 = vmatpush1.msra.mxu0 0.0
  %261 = vmatprep.mubr.f32.mxu0 0.0
  %262 = vmatmul.mubr.f32.gmra.mrb[0].mxu0 %v192
  %v263 = vpop.f32.mrb[0].mxu0
  %v264 = vadd.f32 %v183, %v263
  %v265 = vpop.f32.mrb[0].mxu0
  %266 = vmatprep.mubr.f32.mxu0 0.0
  %267 = vmatmul.mubr.f32.gmra.mrb[0].mxu0 %v195
  %v268 = vpop.f32.mrb[0].mxu0
  %v269 = vadd.f32 %v188, %v268
  %v270 = vpop.f32.mrb[0].mxu0
  %271 = vdwg.mxu0
  %v272 = vmax.f32 %v264, 0.0
  %v273 = vmax.f32 %v269, 0.0
  %275 = vset.pattern.permute.xlu0 0
  %276 = vperm.xlu0 %275, %v35
  %v277 = vpop.permute.xlu0 %276
  %280 = vset.pattern.permute.xlu0 0
  %281 = vperm.xlu0 %280, %v36
  %v282 = vpop.permute.xlu0 %281
  %v284 = vmul.f32 %v272, %v277
  %v285 = vmul.f32 %v273, %v282
  %v286 = vadd.f32 %v284, %v285
  %v287 = vrot.slane %v286, 4
  %v288 = vadd.f32 %v286, %v287
  %v289 = vrot.slane %v288, 2
  %v290 = vadd.f32 %v288, %v289
  %v291 = vrot.slane %v290, 1
  %v292 = vadd.f32 %v290, %v291
  %294 = vset.pattern.permute.xlu0 0
  %295 = vperm.xlu0 %294, %v37
  %v296 = vpop.permute.xlu0 %295
  %v298 = vadd.f32 %v292, %v296
  %299 = vst [vmem:[%s2] sm:$0x1] %v298
  // Predicated region
  $region10: #{critic_forward.1} parent=0 // pred_check
    _
  $region11: #{critic_forward.1} parent=0 // pred_check_branch
    %301 = sbr.rel (0) target = $region13
  $region12: #{critic_forward.1} parent=0 // pred_region
    _
  $region13: #{critic_forward.1} parent=0 // pred_fallthru
    _
  // Predicated region
  $region14: #{critic_forward.1} parent=0 // pred_check
    _
  $region15: #{critic_forward.1} parent=0 // pred_check_branch
    %303 = sbr.rel (0) target = $region17
  $region16: #{critic_forward.1} parent=0 // pred_region
    _
  $region17: #{critic_forward.1} parent=0 // pred_fallthru
    _

</llo_original>
